<compile_context>
chip_gen: v7x
topology: tpu7x:2x2x1
jax: 0.10.0
libtpu: 0.0.40
codegen_flags: <defaults>
</compile_context>

<pallas_src>
import functools

import jax
import jax.numpy as jnp
from jax import lax
from jax.experimental import pallas as pl
from jax.experimental.pallas import tpu as pltpu


# ---------------------------------------------------------------------------
# Shared epilogue: position add + LayerNorm (f32 math, rsqrt -> EUP).
# ---------------------------------------------------------------------------
def _pos_ln(x, pos_ref, gamma_ref, beta_ref, *, use_rope, apply_layer_norm, eps):
    if use_rope:
        # forward() only adds positions / LayerNorm when use_rope=False.
        return x
    x = x + pos_ref[...]
    if apply_layer_norm:
        mean = jnp.mean(x, axis=-1, keepdims=True)
        var = jnp.mean(jnp.square(x - mean), axis=-1, keepdims=True)
        x = (x - mean) * lax.rsqrt(var + eps)          # rsqrt -> EUP slot
        x = x * gamma_ref[...] + beta_ref[...]
        # TODO(synk): nn.Dropout(p=0.1) after LayerNorm is identity in eval mode;
        # training-mode stochastic dropout is not implemented here.
    return x


# ---------------------------------------------------------------------------
# Fast path: token table resident in VMEM, gather = one-hot MXU matmul.
# ---------------------------------------------------------------------------
def _embed_vmem_kernel(ids_ref, tok_ref, pos_ref, gamma_ref, beta_ref, out_ref, *,
                       use_rope, apply_layer_norm, eps):
    V = tok_ref.shape[0]
    seq_tile = ids_ref.shape[2]

    ids = ids_ref[0, 0]                                           # (seq_tile, 1) int32
    onehot = (lax.broadcasted_iota(jnp.int32, (seq_tile, V), 1) == ids)
    onehot = onehot.astype(tok_ref.dtype)                         # (seq_tile, V)
    # Gather as a matmul on the MXU (table is resident in VMEM, so no per-row DMA).
    x = jnp.dot(onehot, tok_ref[...], preferred_element_type=jnp.float32)

    x = _pos_ln(x, pos_ref, gamma_ref, beta_ref, use_rope=use_rope,
                apply_layer_norm=apply_layer_norm, eps=eps)
    out_ref[0] = x.astype(out_ref.dtype)


# ---------------------------------------------------------------------------
# Large-vocab path: table in HBM, per-row DMA gather, double-buffered across the
# inner batch axis of the grid.
# ---------------------------------------------------------------------------
def _embed_hbm_kernel(ids_ref, tok_hbm, pos_ref, gamma_ref, beta_ref, out_ref,
                      gbuf, sems, *, seq_tile, use_rope, apply_layer_norm, eps):
    j = pl.program_id(0)          # sequence-tile index (outer, "parallel")
    b = pl.program_id(1)          # batch index (inner, "arbitrary": look-ahead chain)
    nb = pl.num_programs(1)
    base = j * seq_tile

    def issue_gather(batch_idx, slot):
        # One (1, D) row DMA per token; all started before any wait so their HBM
        # latency overlaps.  All rows of a slot share one counting DMA semaphore.
        @pl.loop(0, seq_tile)
        def _(t):
            tok = ids_ref[batch_idx, base + t]        # ids pre-clamped in the wrapper
            pltpu.make_async_copy(
                tok_hbm.at[pl.ds(tok, 1), :],
                gbuf.at[slot, pl.ds(t, 1), :],
                sems.at[slot],
            ).start()

    def wait_gather(slot):
        @pl.loop(0, seq_tile)
        def _(t):
            pltpu.make_async_copy(
                tok_hbm.at[pl.ds(0, 1), :],           # dummy src view; size must match issue
                gbuf.at[slot, pl.ds(t, 1), :],
                sems.at[slot],
            ).wait()

    cur = lax.rem(b, 2)

    @pl.when(b == 0)              # prime the pipeline at the start of every seq-tile row
    def _():
        issue_gather(b, cur)

    @pl.when(b + 1 < nb)          # prefetch next batch's gather behind this step's compute
    def _():
        issue_gather(b + 1, 1 - cur)

    wait_gather(cur)

    x = gbuf[cur].astype(jnp.float32)                 # native-dtype gather, cast here
    x = _pos_ln(x, pos_ref, gamma_ref, beta_ref, use_rope=use_rope,
                apply_layer_norm=apply_layer_norm, eps=eps)
    out_ref[0] = x.astype(out_ref.dtype)


# ---------------------------------------------------------------------------
# Wrapper
# ---------------------------------------------------------------------------
_SEQ_TILE_CANDIDATES = (256, 128, 64, 32, 16, 8)


def _choose_seq_tile(S, D, requested=None):
    """Pick a seq tile that divides the padded S and keeps the per-step VMEM
    working set (~6 * tile * D * 4 bytes) under ~8 MiB (safe on v5e/v6e/v7x)."""
    if requested is not None:
        assert requested % 8 == 0, "seq_tile must be a multiple of 8"
        s_pad = -(-S // requested) * requested
        return requested, s_pad
    s_pad = -(-S // 8) * 8
    budget = 8 * 1024 * 1024
    for t in _SEQ_TILE_CANDIDATES:
        if s_pad % t == 0 and 6 * t * D * 4 <= budget:
            return t, s_pad
    return 8, s_pad


def embedding_forward(input_ids, tok_table, pos_table, gamma=None, beta=None, *,
                      use_rope=False, apply_layer_norm=True, eps=1e-8,
                      seq_tile=None, out_dtype=None, force_hbm_gather=False,
                      vmem_table_byte_limit=4 * 1024 * 1024):
    B, S = input_ids.shape
    V, D = tok_table.shape
    tok_dtype = jnp.dtype(tok_table.dtype)
    if out_dtype is None:
        out_dtype = tok_dtype

    seq_tile, S_pad = _choose_seq_tile(S, D, seq_tile)
    n_tiles = S_pad // seq_tile

    # Clamp once on the host (keeps scalar work out of the DMA-issue loop).
    # NOTE: PyTorch nn.Embedding would raise on out-of-range ids; we clamp instead.
    ids = jnp.clip(input_ids.astype(jnp.int32), 0, V - 1)
    if S_pad != S:
        ids = jnp.pad(ids, ((0, 0), (0, S_pad - S)))

    # position_ids=None path: positions are arange(S); only the first S_pad rows
    # of the position table are needed.  Small, so kept in f32 for the LN math.
    P = pos_table.shape[0]
    pos_used = pos_table[:min(S_pad, P)].astype(jnp.float32)
    if pos_used.shape[0] < S_pad:
        pos_used = jnp.pad(pos_used, ((0, S_pad - pos_used.shape[0]), (0, 0)))

    if gamma is None:
        gamma = jnp.ones((D,), jnp.float32)     # nn.LayerNorm default init
    if beta is None:
        beta = jnp.zeros((D,), jnp.float32)
    gamma2 = gamma.reshape(1, D).astype(jnp.float32)
    beta2 = beta.reshape(1, D).astype(jnp.float32)

    common = dict(use_rope=use_rope, apply_layer_norm=apply_layer_norm, eps=eps)
    table_bytes = V * D * tok_dtype.itemsize
    use_vmem_table = (not force_hbm_gather and table_bytes <= vmem_table_byte_limit
                      and V <= 4096)

    if use_vmem_table:
        # ---- Small vocab: table resident in VMEM, one-hot MXU gather. ----
        ids4 = ids.reshape(B, n_tiles, seq_tile)[..., None]      # (B, nt, tile, 1)
        kernel = functools.partial(_embed_vmem_kernel, **common)
        out = pl.pallas_call(
            kernel,
            out_shape=jax.ShapeDtypeStruct((B, S_pad, D), out_dtype),
            grid=(n_tiles, B),
            in_specs=[
                pl.BlockSpec((1, 1, seq_tile, 1), lambda j, b: (b, j, 0, 0)),  # ids
                pl.BlockSpec((V, D), lambda j, b: (0, 0)),                     # table (resident)
                pl.BlockSpec((seq_tile, D), lambda j, b: (j, 0)),              # positions
                pl.BlockSpec((1, D), lambda j, b: (0, 0)),                     # LN gamma
                pl.BlockSpec((1, D), lambda j, b: (0, 0)),                     # LN beta
            ],
            out_specs=pl.BlockSpec((1, seq_tile, D), lambda j, b: (b, j, 0)),
            compiler_params=pltpu.CompilerParams(
                dimension_semantics=("parallel", "parallel"),
                vmem_limit_bytes=32 * 1024 * 1024),
        )(ids4, tok_table, pos_used, gamma2, beta2)
    else:
        # ---- Large vocab: table stays in HBM, per-row DMA gather, double-buffered. ----
        kernel = functools.partial(_embed_hbm_kernel, seq_tile=seq_tile, **common)
        out = pl.pallas_call(
            kernel,
            out_shape=jax.ShapeDtypeStruct((B, S_pad, D), out_dtype),
            grid_spec=pltpu.PrefetchScalarGridSpec(
                num_scalar_prefetch=1,                           # ids -> SMEM
                grid=(n_tiles, B),
                in_specs=[
                    pl.BlockSpec(memory_space=pl.ANY),                             # table in HBM
                    pl.BlockSpec((seq_tile, D), lambda j, b, ids_s: (j, 0)),       # positions
                    pl.BlockSpec((1, D), lambda j, b, ids_s: (0, 0)),              # LN gamma
                    pl.BlockSpec((1, D), lambda j, b, ids_s: (0, 0)),              # LN beta
                ],
                out_specs=pl.BlockSpec((1, seq_tile, D),
                                       lambda j, b, ids_s: (b, j, 0)),
                scratch_shapes=[
                    pltpu.VMEM((2, seq_tile, D), tok_dtype),     # double-buffered gather
                    pltpu.SemaphoreType.DMA((2,)),               # one counting sem per slot
                ],
            ),
            compiler_params=pltpu.CompilerParams(
                dimension_semantics=("parallel", "arbitrary"),
                vmem_limit_bytes=32 * 1024 * 1024),
        )(ids, tok_table, pos_used, gamma2, beta2)

    if S_pad != S:
        out = out[:, :S, :]
    return out


# ---------------------------------------------------------------------------
# Pure-JAX reference (gather + pos add + LayerNorm, eval-mode dropout = identity)
# ---------------------------------------------------------------------------
def _reference(input_ids, tok_table, pos_table, gamma, beta, eps=1e-8):
    S = input_ids.shape[1]
    x = tok_table[input_ids]                              # (B, S, D)
    x = x + pos_table[:S][None, :, :]
    mean = x.mean(-1, keepdims=True)
    var = jnp.square(x - mean).mean(-1, keepdims=True)
    return (x - mean) / jnp.sqrt(var + eps) * gamma + beta


if __name__ == "__main__":
    key = jax.random.PRNGKey(0)
    k_tok, k_pos, k_id1, k_id2, k_id3 = jax.random.split(key, 5)

    vocab_size, embedding_dim, max_positions, padding_idx = 64, 128, 32, 0
    batch = 2

    # nn.Embedding default init: N(0, 1); padding_idx row zeroed.
    tok_f32 = jax.random.normal(k_tok, (vocab_size, embedding_dim), jnp.float32)
    tok_f32 = tok_f32.at[padding_idx].set(0.0)
    pos_tab = jax.random.normal(k_pos, (max_positions, embedding_dim), jnp.float32)
    gamma = jnp.ones((embedding_dim,), jnp.float32)       # nn.LayerNorm default init
    beta = jnp.zeros((embedding_dim,), jnp.float32)

    # 1) Small-vocab fast path: table resident in VMEM, one-hot MXU gather.
    seq1 = 8
    ids1 = jax.random.randint(k_id1, (batch, seq1), 0, vocab_size, jnp.int32)
    out1 = jax.block_until_ready(
        embedding_forward(ids1, tok_f32, pos_tab, gamma, beta))
    ref1 = _reference(ids1, tok_f32, pos_tab, gamma, beta)
    assert out1.shape == (batch, seq1, embedding_dim)
    assert jnp.allclose(out1, ref1, atol=2e-2, rtol=2e-2), "VMEM fast path mismatch"

    # 2) Large-vocab path (forced): HBM table + per-row DMA gather with cross-batch
    #    double buffering and multiple sequence tiles.  Exact gather -> tight check.
    seq2 = 16
    ids2 = jax.random.randint(k_id2, (batch, seq2), 0, vocab_size, jnp.int32)
    out2 = jax.block_until_ready(
        embedding_forward(ids2, tok_f32, pos_tab, gamma, beta,
                          force_hbm_gather=True, seq_tile=8))
    ref2 = _reference(ids2, tok_f32, pos_tab, gamma, beta)
    assert out2.shape == (batch, seq2, embedding_dim)
    assert jnp.allclose(out2, ref2, atol=1e-4, rtol=1e-4), "HBM gather path mismatch"

    # 3) bf16 table (no host f32 upcast), bf16 output, ragged S (padding path).
    seq3 = 12
    tok_bf16 = tok_f32.astype(jnp.bfloat16)
    ids3 = jax.random.randint(k_id3, (batch, seq3), 0, vocab_size, jnp.int32)
    out3 = jax.block_until_ready(
        embedding_forward(ids3, tok_bf16, pos_tab, gamma, beta))
    ref3 = _reference(ids3, tok_bf16.astype(jnp.float32), pos_tab, gamma, beta)
    assert out3.shape == (batch, seq3, embedding_dim)
    assert out3.dtype == jnp.bfloat16
    assert jnp.allclose(out3.astype(jnp.float32), ref3, atol=5e-2, rtol=5e-2), \
        "bf16 / padded path mismatch"

    print("KERNEL_OK")
</pallas_src>

<mosaic_0001>
module attributes {stable_mosaic.version = 11 : i64} {
  func.func @_embed_vmem_kernel(%arg0: i32, %arg1: i32, %arg2: memref<1x1x8x1xi32, #tpu.memory_space<vmem>>, %arg3: memref<64x128xf32, #tpu.memory_space<vmem>>, %arg4: memref<8x128xf32, #tpu.memory_space<vmem>>, %arg5: memref<1x128xf32, #tpu.memory_space<vmem>>, %arg6: memref<1x128xf32, #tpu.memory_space<vmem>>, %arg7: memref<1x8x128xf32, #tpu.memory_space<vmem>>) attributes {dimension_semantics = [#tpu.dimension_semantics<parallel>, #tpu.dimension_semantics<parallel>], iteration_bounds = array<i64: 1, 2>, scalar_prefetch = 0 : i64, scratch_operands = 0 : i64, tpu.core_type = #tpu.core_type<tc>, window_params = [{transform_indices = @transform_0, window_bounds = array<i64: 1, 1, 8, 1>}, {pipeline_mode = #tpu.pipeline_mode<synchronous>, transform_indices = @transform_1, window_bounds = array<i64: 64, 128>}, {transform_indices = @transform_2, window_bounds = array<i64: 8, 128>}, {pipeline_mode = #tpu.pipeline_mode<synchronous>, transform_indices = @transform_3, window_bounds = array<i64: 1, 128>}, {pipeline_mode = #tpu.pipeline_mode<synchronous>, transform_indices = @transform_4, window_bounds = array<i64: 1, 128>}, {transform_indices = @transform_5, window_bounds = array<i64: 1, 8, 128>}]} {
    %c0 = arith.constant 0 : index
    %c0_0 = arith.constant 0 : index
    %c0_1 = arith.constant 0 : index
    %c0_2 = arith.constant 0 : index
    %0 = vector.load %arg2[%c0, %c0_0, %c0_1, %c0_2] : memref<1x1x8x1xi32, #tpu.memory_space<vmem>>, vector<1x1x8x1xi32>
    %1 = vector.shape_cast %0 : vector<1x1x8x1xi32> to vector<8x1xi32>
    %2 = tpu.iota {dimensions = array<i32: 1>} : vector<8x64xi32>
    %3 = vector.broadcast %1 : vector<8x1xi32> to vector<8x64xi32>
    %4 = arith.cmpi eq, %2, %3 : vector<8x64xi32>
    %5 = arith.extui %4 : vector<8x64xi1> to vector<8x64xi32>
    %6 = arith.sitofp %5 : vector<8x64xi32> to vector<8x64xf32>
    %c0_3 = arith.constant 0 : index
    %c0_4 = arith.constant 0 : index
    %7 = vector.load %arg3[%c0_3, %c0_4] : memref<64x128xf32, #tpu.memory_space<vmem>>, vector<64x128xf32>
    %cst = arith.constant dense<0.000000e+00> : vector<8x128xf32>
    %8 = tpu.matmul %6, %7, %cst {dimension_numbers = #tpu.dot_dimension_numbers<[1], [0], [0], [1], [0, 0, 1, 1], [], []>} : vector<8x64xf32>, vector<64x128xf32>, vector<8x128xf32> -> vector<8x128xf32>
    %c0_5 = arith.constant 0 : index
    %c0_6 = arith.constant 0 : index
    %9 = vector.load %arg4[%c0_5, %c0_6] : memref<8x128xf32, #tpu.memory_space<vmem>>, vector<8x128xf32>
    %10 = arith.addf %8, %9 : vector<8x128xf32>
    %cst_7 = arith.constant dense<0.000000e+00> : vector<8xf32>
    %11 = vector.multi_reduction <add>, %10, %cst_7 [1] : vector<8x128xf32> to vector<8xf32>
    %12 = vector.shape_cast %11 : vector<8xf32> to vector<8x1xf32>
    %cst_8 = arith.constant 1.280000e+02 : f32
    %13 = vector.broadcast %cst_8 : f32 to vector<8x1xf32>
    %14 = arith.divf %12, %13 : vector<8x1xf32>
    %15 = vector.broadcast %14 : vector<8x1xf32> to vector<8x128xf32>
    %16 = arith.subf %10, %15 : vector<8x128xf32>
    %17 = arith.mulf %16, %16 : vector<8x128xf32>
    %cst_9 = arith.constant dense<0.000000e+00> : vector<8xf32>
    %18 = vector.multi_reduction <add>, %17, %cst_9 [1] : vector<8x128xf32> to vector<8xf32>
    %19 = vector.shape_cast %18 : vector<8xf32> to vector<8x1xf32>
    %cst_10 = arith.constant 1.280000e+02 : f32
    %20 = vector.broadcast %cst_10 : f32 to vector<8x1xf32>
    %21 = arith.divf %19, %20 : vector<8x1xf32>
    %22 = vector.broadcast %14 : vector<8x1xf32> to vector<8x128xf32>
    %23 = arith.subf %10, %22 : vector<8x128xf32>
    %cst_11 = arith.constant 9.99999993E-9 : f32
    %24 = vector.broadcast %cst_11 : f32 to vector<8x1xf32>
    %25 = arith.addf %21, %24 : vector<8x1xf32>
    %26 = math.rsqrt %25 : vector<8x1xf32>
    %27 = vector.broadcast %26 : vector<8x1xf32> to vector<8x128xf32>
    %28 = arith.mulf %23, %27 : vector<8x128xf32>
    %c0_12 = arith.constant 0 : index
    %c0_13 = arith.constant 0 : index
    %29 = vector.load %arg5[%c0_12, %c0_13] : memref<1x128xf32, #tpu.memory_space<vmem>>, vector<1x128xf32>
    %30 = vector.broadcast %29 : vector<1x128xf32> to vector<8x128xf32>
    %31 = arith.mulf %28, %30 : vector<8x128xf32>
    %c0_14 = arith.constant 0 : index
    %c0_15 = arith.constant 0 : index
    %32 = vector.load %arg6[%c0_14, %c0_15] : memref<1x128xf32, #tpu.memory_space<vmem>>, vector<1x128xf32>
    %33 = vector.broadcast %32 : vector<1x128xf32> to vector<8x128xf32>
    %34 = arith.addf %31, %33 : vector<8x128xf32>
    %c0_16 = arith.constant 0 : index
    %c0_17 = arith.constant 0 : index
    %c0_18 = arith.constant 0 : index
    %35 = vector.load %arg7[%c0_16, %c0_17, %c0_18] : memref<1x8x128xf32, #tpu.memory_space<vmem>>, vector<1x8x128xf32>
    %36 = vector.shape_cast %35 : vector<1x8x128xf32> to vector<8x128xf32>
    %37 = vector.shape_cast %34 : vector<8x128xf32> to vector<1x8x128xf32>
    tpu.vector_store %arg7[%c0_16, %c0_17, %c0_18], %37 {strides = array<i32>} : memref<1x8x128xf32, #tpu.memory_space<vmem>>, vector<1x8x128xf32>,
    return
  }
  func.func @transform_0(%arg0: i32, %arg1: i32) -> (i32, i32, i32, i32) {
    %c0_i32 = arith.constant 0 : i32
    %c0_i32_0 = arith.constant 0 : i32
    %c0_i32_1 = arith.constant 0 : i32
    return %arg1, %arg0, %c0_i32, %c0_i32_0 : i32, i32, i32, i32
  }
  func.func @transform_1(%arg0: i32, %arg1: i32) -> (i32, i32) {
    %c0_i32 = arith.constant 0 : i32
    %c0_i32_0 = arith.constant 0 : i32
    %c0_i32_1 = arith.constant 0 : i32
    return %c0_i32, %c0_i32_0 : i32, i32
  }
  func.func @transform_2(%arg0: i32, %arg1: i32) -> (i32, i32) {
    %c0_i32 = arith.constant 0 : i32
    %c0_i32_0 = arith.constant 0 : i32
    return %arg0, %c0_i32 : i32, i32
  }
  func.func @transform_3(%arg0: i32, %arg1: i32) -> (i32, i32) {
    %c0_i32 = arith.constant 0 : i32
    %c0_i32_0 = arith.constant 0 : i32
    %c0_i32_1 = arith.constant 0 : i32
    return %c0_i32, %c0_i32_0 : i32, i32
  }
  func.func @transform_4(%arg0: i32, %arg1: i32) -> (i32, i32) {
    %c0_i32 = arith.constant 0 : i32
    %c0_i32_0 = arith.constant 0 : i32
    %c0_i32_1 = arith.constant 0 : i32
    return %c0_i32, %c0_i32_0 : i32, i32
  }
  func.func @transform_5(%arg0: i32, %arg1: i32) -> (i32, i32, i32) {
    %c0_i32 = arith.constant 0 : i32
    %c0_i32_0 = arith.constant 0 : i32
    return %arg1, %arg0, %c0_i32 : i32, i32, i32
  }
}

</mosaic_0001>

<llo_original>
// kernel: tpu_custom_call.1
$region0: #{tpu_custom_call.1}
  #allocation0 [shape = 'u32[]', space=smem, size = 0x4, offset = 0x4, fixed_abs, tag = 'smem constant byte address 0x4 - core index']
  #allocation1 [shape = 'u32[144,128]{1,0:T(1,128)}', space=vmem, size = 0x12000, scoped, tag = 'internal scratch']
  %s0 = inlined_call_operand.vmem [shape: s32[2,1,8,1], index: 0, kind: input, shape index: {}]
  %s1 = inlined_call_operand.hbm [shape: f32[64,128], index: 1, kind: input, shape index: {}]
  %s2 = inlined_call_operand.vmem [shape: f32[8,128], index: 2, kind: input, shape index: {}]
  %s3 = inlined_call_operand.vmem [shape: f32[1,128], index: 3, kind: input, shape index: {}]
  %s4 = inlined_call_operand.vmem [shape: f32[1,128], index: 4, kind: input, shape index: {}]
  %s5 = inlined_call_operand.hbm [shape: f32[2,8,128], index: 5, kind: output, shape index: {}]
  %s6 = sld [smem:[#allocation0]]
  $region57: #{tpu_custom_call.1} parent=0
    _
  %s8 = ssub.s32 1, %s6
  %s9 = scalar_select 0, %s8, %s6
  $region1: #{tpu_custom_call.1} parent=0
    #allocation2 [shape = 'u8[32768]{0}', space=vmem, size = 0x8000, scoped, tag = 'input window, operand 1, single buffered']
    #allocation3 [shape = 's32[2]{0}', space=sflag, size = 0x8, scoped, tag = 'scoped memory for tpu_custom_call.1']
    #allocation4 [shape = 's32[2]{0}', space=sflag, size = 0x8, scoped, tag = 'scoped memory for tpu_custom_call.1']
    #allocation5 [shape = 'u8[8192]{0}', space=vmem, size = 0x2000, scoped, tag = 'output window, operand 0']
    %10 = vsyncpa [#allocation3], 0
    %11 = vsyncpa [#allocation4], 0
    %s12 = scalar_lea.sflag [#allocation4], 1
    %13 = vsyncpa %s12, 0
    loop: start=0, step=1, limit=4
    $region2: #{tpu_custom_call.1} parent=1 // loop_pre_header
      _
    $region3: #{tpu_custom_call.1} parent=1 // loop_header
      %s15 = sphi 0, %s19
      %p16 = scmp.ge.s32.totalorder %s15, 4
      %s22 = sphi 0, %s34
      %s23 = sphi 0, %s30
      %s24 = sphi 0, %s22
      %s25 = sphi 0, %s23
      %s26 = sphi 0, %s24
      %s27 = sphi 0, %s25
      %s39 = sphi 0, %s41
      %s42 = sphi 0, %s39
      %s43 = sphi 0, %s42
      %s59 = sphi 0, %s43
      %s63 = sphi 0, %s63
      %s65 = sphi 0, %s63
      %s66 = sphi 0, %s65
      %s80 = sphi 0, %s66
      %s86 = sphi 0, %s88
      %s89 = sphi 0, %s86
      %s90 = sphi 0, %s89
      %s106 = sphi 0, %s90
      %s110 = sphi 0, %s110
      %s112 = sphi 0, %s110
      %s113 = sphi 0, %s112
      %s127 = sphi 0, %s113
      %s131 = sphi 0, %s131
      %s133 = sphi 0, %s131
      %s134 = sphi 0, %s133
      %s148 = sphi 0, %s134
      %s156 = sphi 0, %s158
      %s159 = sphi 0, %s156
      %s160 = sphi 0, %s159
      %s176 = sphi 0, %s160
    $region4: #{tpu_custom_call.1} parent=1 // loop_header_branch
      %18 = sbr.rel (%p16) target = $region8
    $region5: #{tpu_custom_call.1} parent=1 // loop_body
      %s20 = ssub.s32 %s15, 1
      %s21 = ssub.s32 %s15, 2
      %s28 = sadd.s32 1, %s23
      %p29 = scmp.ge.s32.totalorder %s28, 2
      %s30 = scalar_select %p29, 0, %s28
      %s31 = sadd.s32 1, %s22
      %s32 = scalar_select %p29, %s31, %s22
      %p33 = scmp.ge.s32.totalorder %s32, 1
      %s34 = scalar_select %p33, 0, %s32
      %s35 = ssub.s32 %s23, %s30
      %s36 = ssub.s32 %s22, %s34
      %s37 = sor.u32 %s35, %s36
      %p38 = scmp.eq.s32.totalorder %s37, 0
      %s40 = sadd.s32 %s39, 1
      %s41 = scalar_select %p38, %s39, %s40
      %p44 = pneg %p38
      %p45 = scmp.eq.s32.totalorder %s15, 1
      %p46 = por %p44, %p45
      %p47 = scmp.ne.s32.totalorder %s39, %s42
      %p48 = scmp.eq.s32.totalorder %s15, 0
      %p49 = por %p47, %p48
      %p50 = scmp.ne.s32.totalorder %s39, %s42
      %p51 = scmp.eq.s32.totalorder %s20, 1
      %p52 = por %p50, %p51
      %p53 = scmp.ne.s32.totalorder %s42, %s43
      %p54 = scmp.eq.s32.totalorder %s20, 0
      %p55 = por %p53, %p54
      %p56 = scmp.ne.s32.totalorder %s42, %s43
      %p57 = scmp.eq.s32.totalorder %s21, 1
      %p58 = por %p56, %p57
      %p60 = scmp.ne.s32.totalorder %s43, %s59
      %p61 = scmp.eq.s32.totalorder %s21, 0
      %p62 = por %p60, %p61
      %s64 = sadd.s32 %s63, 1
      %p67 = scmp.eq.s32.totalorder %s15, 1
      %p68 = scmp.ne.s32.totalorder %s63, %s65
      %p69 = scmp.eq.s32.totalorder %s15, 0
      %p70 = por %p68, %p69
      %p71 = scmp.ne.s32.totalorder %s63, %s65
      %p72 = scmp.eq.s32.totalorder %s20, 1
      %p73 = por %p71, %p72
      %p74 = scmp.ne.s32.totalorder %s65, %s66
      %p75 = scmp.eq.s32.totalorder %s20, 0
      %p76 = por %p74, %p75
      %p77 = scmp.ne.s32.totalorder %s65, %s66
      %p78 = scmp.eq.s32.totalorder %s21, 1
      %p79 = por %p77, %p78
      %p81 = scmp.ne.s32.totalorder %s66, %s80
      %p82 = scmp.eq.s32.totalorder %s21, 0
      %p83 = por %p81, %p82
      %s84 = ssub.s32 %s22, %s34
      %p85 = scmp.eq.s32.totalorder %s84, 0
      %s87 = sadd.s32 %s86, 1
      %s88 = scalar_select %p85, %s86, %s87
      %p91 = pneg %p85
      %p92 = scmp.eq.s32.totalorder %s15, 1
      %p93 = por %p91, %p92
      %p94 = scmp.ne.s32.totalorder %s86, %s89
      %p95 = scmp.eq.s32.totalorder %s15, 0
      %p96 = por %p94, %p95
      %p97 = scmp.ne.s32.totalorder %s86, %s89
      %p98 = scmp.eq.s32.totalorder %s20, 1
      %p99 = por %p97, %p98
      %p100 = scmp.ne.s32.totalorder %s89, %s90
      %p101 = scmp.eq.s32.totalorder %s20, 0
      %p102 = por %p100, %p101
      %p103 = scmp.ne.s32.totalorder %s89, %s90
      %p104 = scmp.eq.s32.totalorder %s21, 1
      %p105 = por %p103, %p104
      %p107 = scmp.ne.s32.totalorder %s90, %s106
      %p108 = scmp.eq.s32.totalorder %s21, 0
      %p109 = por %p107, %p108
      %s111 = sadd.s32 %s110, 1
      %p114 = scmp.eq.s32.totalorder %s15, 1
      %p115 = scmp.ne.s32.totalorder %s110, %s112
      %p116 = scmp.eq.s32.totalorder %s15, 0
      %p117 = por %p115, %p116
      %p118 = scmp.ne.s32.totalorder %s110, %s112
      %p119 = scmp.eq.s32.totalorder %s20, 1
      %p120 = por %p118, %p119
      %p121 = scmp.ne.s32.totalorder %s112, %s113
      %p122 = scmp.eq.s32.totalorder %s20, 0
      %p123 = por %p121, %p122
      %p124 = scmp.ne.s32.totalorder %s112, %s113
      %p125 = scmp.eq.s32.totalorder %s21, 1
      %p126 = por %p124, %p125
      %p128 = scmp.ne.s32.totalorder %s113, %s127
      %p129 = scmp.eq.s32.totalorder %s21, 0
      %p130 = por %p128, %p129
      %s132 = sadd.s32 %s131, 1
      %p135 = scmp.eq.s32.totalorder %s15, 1
      %p136 = scmp.ne.s32.totalorder %s131, %s133
      %p137 = scmp.eq.s32.totalorder %s15, 0
      %p138 = por %p136, %p137
      %p139 = scmp.ne.s32.totalorder %s131, %s133
      %p140 = scmp.eq.s32.totalorder %s20, 1
      %p141 = por %p139, %p140
      %p142 = scmp.ne.s32.totalorder %s133, %s134
      %p143 = scmp.eq.s32.totalorder %s20, 0
      %p144 = por %p142, %p143
      %p145 = scmp.ne.s32.totalorder %s133, %s134
      %p146 = scmp.eq.s32.totalorder %s21, 1
      %p147 = por %p145, %p146
      %p149 = scmp.ne.s32.totalorder %s134, %s148
      %p150 = scmp.eq.s32.totalorder %s21, 0
      %p151 = por %p149, %p150
      %s152 = ssub.s32 %s23, %s30
      %s153 = ssub.s32 %s22, %s34
      %s154 = sor.u32 %s152, %s153
      %p155 = scmp.eq.s32.totalorder %s154, 0
      %s157 = sadd.s32 %s156, 1
      %s158 = scalar_select %p155, %s156, %s157
      %p161 = pneg %p155
      %p162 = scmp.eq.s32.totalorder %s15, 1
      %p163 = por %p161, %p162
      %p164 = scmp.ne.s32.totalorder %s156, %s159
      %p165 = scmp.eq.s32.totalorder %s15, 0
      %p166 = por %p164, %p165
      %p167 = scmp.ne.s32.totalorder %s156, %s159
      %p168 = scmp.eq.s32.totalorder %s20, 1
      %p169 = por %p167, %p168
      %p170 = scmp.ne.s32.totalorder %s159, %s160
      %p171 = scmp.eq.s32.totalorder %s20, 0
      %p172 = por %p170, %p171
      %p173 = scmp.ne.s32.totalorder %s159, %s160
      %p174 = scmp.eq.s32.totalorder %s21, 1
      %p175 = por %p173, %p174
      %p177 = scmp.ne.s32.totalorder %s160, %s176
      %p178 = scmp.eq.s32.totalorder %s21, 0
      %p179 = por %p177, %p178
      %p180 = scmp.le.s32.totalorder 1, %s15
      %p181 = scmp.lt.s32.totalorder %s15, 3
      %p182 = pnand %p180, %p181
      %p183 = pneg %p182
      // Predicated region
      $region9: #{tpu_custom_call.1} parent=5 // pred_check
        _
      $region10: #{tpu_custom_call.1} parent=5 // pred_check_branch
        %185 = sbr.rel (%p182) target = $region12
      $region11: #{tpu_custom_call.1} parent=5 // pred_region
        %s186 = ssub.s32 %s15, 1
        // Predicated region
        $region13: #{tpu_custom_call.1} parent=11 // pred_check
          %p187 = pneg %p76
        $region14: #{tpu_custom_call.1} parent=11 // pred_check_branch
          %189 = sbr.rel (%p187) target = $region16
        $region15: #{tpu_custom_call.1} parent=11 // pred_region
          %s191 = ssub.s32 1024, 1024
          %192 = vsyncadd [#allocation3], %s191
          %s193 = sshll.u32 [#allocation2], 4
          %s194 = int_to_ptr.vmem [resolvable:$true] %s193
          %199 = dma.hbm_to_vmem [thread:$0]  %s1, 1024, %s194, [#allocation3], 128, 128, 8
        $region16: #{tpu_custom_call.1} parent=11 // pred_fallthru
          _
        // Predicated region
        $region17: #{tpu_custom_call.1} parent=11 // pred_check
          %p200 = pneg %p102
        $region18: #{tpu_custom_call.1} parent=11 // pred_check_branch
          %202 = sbr.rel (%p200) target = $region20
        $region19: #{tpu_custom_call.1} parent=11 // pred_region
          %p203 = scmp.lt.s32.totalorder %s24, 0
          %s204 = scalar_select %p203, %s24, 0
          %s205 = smul.addr %s204, 8
          %s206 = scalar_lea.vmem %s2, %s205
        $region20: #{tpu_custom_call.1} parent=11 // pred_fallthru
          _
        // Predicated region
        $region21: #{tpu_custom_call.1} parent=11 // pred_check
          %p207 = pneg %p123
        $region22: #{tpu_custom_call.1} parent=11 // pred_check_branch
          %209 = sbr.rel (%p207) target = $region24
        $region23: #{tpu_custom_call.1} parent=11 // pred_region
          _
        $region24: #{tpu_custom_call.1} parent=11 // pred_fallthru
          _
        // Predicated region
        $region25: #{tpu_custom_call.1} parent=11 // pred_check
          %p210 = pneg %p144
        $region26: #{tpu_custom_call.1} parent=11 // pred_check_branch
          %212 = sbr.rel (%p210) target = $region28
        $region27: #{tpu_custom_call.1} parent=11 // pred_region
          _
        $region28: #{tpu_custom_call.1} parent=11 // pred_fallthru
          _
      $region12: #{tpu_custom_call.1} parent=5 // pred_fallthru
        _
      %p213 = scmp.lt.s32.totalorder %s15, 2
      // Predicated region
      $region29: #{tpu_custom_call.1} parent=5 // pred_check
        %p214 = pneg %p213
      $region30: #{tpu_custom_call.1} parent=5 // pred_check_branch
        %216 = sbr.rel (%p214) target = $region32
      $region31: #{tpu_custom_call.1} parent=5 // pred_region
        // Predicated region
        $region33: #{tpu_custom_call.1} parent=31 // pred_check
          %p217 = pneg %p49
        $region34: #{tpu_custom_call.1} parent=31 // pred_check_branch
          %219 = sbr.rel (%p217) target = $region36
        $region35: #{tpu_custom_call.1} parent=31 // pred_region
          %p220 = scmp.lt.s32.totalorder %s23, 1
          %s221 = scalar_select %p220, %s23, 1
          %p222 = scmp.lt.s32.totalorder %s22, 0
          %s223 = scalar_select %p222, %s22, 0
          %s224 = sadd.s32 %s223, %s221
          %s225 = smul.addr %s224, 8
          %s226 = scalar_lea.vmem %s0, %s225
        $region36: #{tpu_custom_call.1} parent=31 // pred_fallthru
          _
      $region32: #{tpu_custom_call.1} parent=5 // pred_fallthru
        _
      %p227 = scmp.le.s32.totalorder 1, %s15
      %p228 = scmp.lt.s32.totalorder %s15, 3
      %p229 = pnand %p227, %p228
      %p230 = pneg %p229
      // Predicated region
      $region37: #{tpu_custom_call.1} parent=5 // pred_check
        _
      $region38: #{tpu_custom_call.1} parent=5 // pred_check_branch
        %232 = sbr.rel (%p229) target = $region40
      $region39: #{tpu_custom_call.1} parent=5 // pred_region
        %s233 = ssub.s32 %s15, 1
        // Predicated region
        $region41: #{tpu_custom_call.1} parent=39 // pred_check
          %p234 = pneg %p76
        $region42: #{tpu_custom_call.1} parent=39 // pred_check_branch
          %236 = sbr.rel (%p234) target = $region44
        $region43: #{tpu_custom_call.1} parent=39 // pred_region
          %237 = dma.done [#allocation3], 1024
        $region44: #{tpu_custom_call.1} parent=39 // pred_fallthru
          _
        %p238 = scmp.lt.s32.totalorder %s25, 1
        %s239 = scalar_select %p238, %s25, 1
        %p240 = scmp.lt.s32.totalorder %s24, 0
        %s241 = scalar_select %p240, %s24, 0
        %s242 = sadd.s32 %s241, %s239
        %s243 = smul.addr %s242, 8
        %s244 = scalar_lea.vmem %s0, %s243
        %p245 = pneg %p55
        %p246 = pneg %p52
        %p247 = pneg %p76
        %p248 = pneg %p73
        %p249 = scmp.lt.s32.totalorder %s24, 0
        %s250 = scalar_select %p249, %s24, 0
        %s251 = smul.addr %s250, 8
        %s252 = scalar_lea.vmem %s2, %s251
        %p253 = pneg %p102
        %p254 = pneg %p99
        %p255 = pneg %p123
        %p256 = pneg %p120
        %p257 = pneg %p144
        %p258 = pneg %p141
        %p259 = pneg %p172
        %p260 = pneg %p169
        %s261 = sand.u32 %s159, 1
        %s262 = scalar_lea.sflag [#allocation4], %s261
        %s263 = sand.u32 %s159, 1
        %s264 = smul.addr %s263, 8
        %s265 = scalar_lea.vmem [#allocation5], %s264
        %p266 = scmp.lt.s32.totalorder %s25, 1
        %s267 = scalar_select %p266, %s25, 1
        %p268 = scmp.lt.s32.totalorder %s24, 0
        %s269 = scalar_select %p268, %s24, 0
        %s270 = sadd.s32 %s269, %s267
        %s271 = smul.addr %s270, 8
        %s272 = scalar_lea.vmem %s0, %s271
        %p273 = scmp.lt.s32.totalorder %s24, 0
        %s274 = scalar_select %p273, %s24, 0
        %s275 = smul.addr %s274, 8
        %s276 = scalar_lea.vmem %s2, %s275
        %v277 = vld [vmem:[%s272] sm:$0xff]
        %v278 = vlaneseq
        %v279 = vand.u32 %v278, 127
        %280 = vset.pattern.permute.xlu0 0
        %281 = vperm.xlu0 %280, %v277
        %v282 = vpop.permute.xlu0 %281
        %vm283 = vcmp.eq.s32.totalorder %v279, %v282
        %v284 = vsel %vm283, 1, 0
        %v285 = vcvt.s32.f32 %v284
        %v286 = vld [vmem:[#allocation2] sm:$0xff]
        %v287 = vld [vmem:[#allocation2 + $0x8] sm:$0xff]
        %v288 = vld [vmem:[#allocation2 + $0x10] sm:$0xff]
        %v289 = vld [vmem:[#allocation2 + $0x18] sm:$0xff]
        %v290 = vld [vmem:[#allocation2 + $0x20] sm:$0xff]
        %v291 = vld [vmem:[#allocation2 + $0x28] sm:$0xff]
        %v292 = vld [vmem:[#allocation2 + $0x30] sm:$0xff]
        %v293 = vld [vmem:[#allocation2 + $0x38] sm:$0xff]
        %v294 = vld [vmem:[%s276] sm:$0xff]
        %vm295 = vcmask 523264
        %v297 = vsel %vm295, %v285, 0
        %299 = vmatprep.subr.mxu0 0.0
        %300 = vmatpush1.msra.mxu0 %v286
        %301 = vmatprep.subr.mxu0 0.0
        %302 = vmatpush1.msra.mxu0 %v287
        %303 = vmatprep.subr.mxu0 0.0
        %304 = vmatpush1.msra.mxu0 %v288
        %305 = vmatprep.subr.mxu0 0.0
        %306 = vmatpush1.msra.mxu0 %v289
        %307 = vmatprep.subr.mxu0 0.0
        %308 = vmatpush1.msra.mxu0 %v290
        %309 = vmatprep.subr.mxu0 0.0
        %310 = vmatpush1.msra.mxu0 %v291
        %311 = vmatprep.subr.mxu0 0.0
        %312 = vmatpush1.msra.mxu0 %v292
        %313 = vmatprep.subr.mxu0 0.0
        %314 = vmatpush1.msra.mxu0 %v293
        %315 = vmatprep.subr.mxu0 0.0
        %316 = vmatpush1.msra.mxu0 0.0
        %317 = vmatprep.subr.mxu0 0.0
        %318 = vmatpush1.msra.mxu0 0.0
        %319 = vmatprep.subr.mxu0 0.0
        %320 = vmatpush1.msra.mxu0 0.0
        %321 = vmatprep.subr.mxu0 0.0
        %322 = vmatpush1.msra.mxu0 0.0
        %323 = vmatprep.subr.mxu0 0.0
        %324 = vmatpush1.msra.mxu0 0.0
        %325 = vmatprep.subr.mxu0 0.0
        %326 = vmatpush1.msra.mxu0 0.0
        %327 = vmatprep.subr.mxu0 0.0
        %328 = vmatpush1.msra.mxu0 0.0
        %329 = vmatprep.subr.mxu0 0.0
        %330 = vmatpush1.msra.mxu0 0.0
        %331 = vmatprep.subr.mxu0 0.0
        %332 = vmatpush1.msra.mxu0 0.0
        %333 = vmatprep.subr.mxu0 0.0
        %334 = vmatpush1.msra.mxu0 0.0
        %335 = vmatprep.subr.mxu0 0.0
        %336 = vmatpush1.msra.mxu0 0.0
        %337 = vmatprep.subr.mxu0 0.0
        %338 = vmatpush1.msra.mxu0 0.0
        %339 = vmatprep.subr.mxu0 0.0
        %340 = vmatpush1.msra.mxu0 0.0
        %341 = vmatprep.subr.mxu0 0.0
        %342 = vmatpush1.msra.mxu0 0.0
        %343 = vmatprep.subr.mxu0 0.0
        %344 = vmatpush1.msra.mxu0 0.0
        %345 = vmatprep.subr.mxu0 0.0
        %346 = vmatpush1.msra.mxu0 0.0
        %347 = vmatprep.subr.mxu0 0.0
        %348 = vmatpush1.msra.mxu0 0.0
        %349 = vmatprep.subr.mxu0 0.0
        %350 = vmatpush1.msra.mxu0 0.0
        %351 = vmatprep.subr.mxu0 0.0
        %352 = vmatpush1.msra.mxu0 0.0
        %353 = vmatprep.subr.mxu0 0.0
        %354 = vmatpush1.msra.mxu0 0.0
        %355 = vmatprep.subr.mxu0 0.0
        %356 = vmatpush1.msra.mxu0 0.0
        %357 = vmatprep.subr.mxu0 0.0
        %358 = vmatpush1.msra.mxu0 0.0
        %359 = vmatprep.subr.mxu0 0.0
        %360 = vmatpush1.msra.mxu0 0.0
        %361 = vmatprep.subr.mxu0 0.0
        %362 = vmatpush1.msra.mxu0 0.0
        %363 = vmatprep.mubr.f32.mxu0 0.0
        %364 = vmatmul.mubr.f32.gmra.mrb[0].mxu0 %v297
        %v365 = vpop.f32.mrb[0].mxu0
        %v366 = vadd.f32 %v294, %v365
        %v367 = vpop.f32.mrb[0].mxu0
        %368 = vdwg.mxu0
        %369 = vadd.xlane.f32.xlu0 %v366
        %v370 = vpop.xlane.xlu0 %369
        %v371 = vrcp.pop 128.0
        %v372 = vmul.f32 %v370, %v371
        %v373 = vsub.f32 %v366, %v372
        %v374 = vmul.f32 %v373, %v373
        %375 = vadd.xlane.f32.xlu0 %v374
        %v376 = vpop.xlane.xlu0 %375
        %v377 = vmul.f32 %v376, %v371
        %v378 = vadd.f32 %v377, 1e-08
        %v379 = vrsqrt.pop %v378
        %v380 = vmul.f32 %v373, %v379
        %v381 = vld [vmem:[%s3] sm:$0x1]
        %v383 = vlaneseq
        %v384 = vshrl.u32 %v383, 7
        %v385 = vsub.s32 0, %v384
        %v386 = vrot.slane %v381, %v385
        %v388 = vmul.f32 %v380, %v386
        %v389 = vld [vmem:[%s4] sm:$0x1]
        %v391 = vlaneseq
        %v392 = vshrl.u32 %v391, 7
        %v393 = vsub.s32 0, %v392
        %v394 = vrot.slane %v389, %v393
        %v396 = vadd.f32 %v388, %v394
        %397 = vst [vmem:[%s265] sm:$0xff] %v396
        %s398 = sand.u32 %s159, 1
        %s399 = scalar_lea.sflag [#allocation4], %s398
        %s400 = sand.u32 %s159, 1
        %s401 = smul.addr %s400, 8
        %s402 = scalar_lea.vmem [#allocation5], %s401
        // Predicated region
        $region45: #{tpu_custom_call.1} parent=39 // pred_check
          %p403 = pneg %p169
        $region46: #{tpu_custom_call.1} parent=39 // pred_check_branch
          %405 = sbr.rel (%p403) target = $region48
        $region47: #{tpu_custom_call.1} parent=39 // pred_region
          %s407 = ssub.s32 128, 128
          %408 = vsyncadd %s399, %s407
          %s409 = sadd.s32 %s24, %s25
          %s410 = smul.addr %s409, 128
          %s411 = scalar_lea.hbm %s5, %s410
          %s413 = sshll.u32 %s402, 4
          %s414 = int_to_ptr.vmem [resolvable:$true] %s413
          %416 = dma.vmem_to_hbm [thread:$0]  %s414, 128, %s411, %s399
        $region48: #{tpu_custom_call.1} parent=39 // pred_fallthru
          _
      $region40: #{tpu_custom_call.1} parent=5 // pred_fallthru
        _
      %p417 = scmp.le.s32.totalorder 2, %s15
      // Predicated region
      $region49: #{tpu_custom_call.1} parent=5 // pred_check
        %p418 = pneg %p417
      $region50: #{tpu_custom_call.1} parent=5 // pred_check_branch
        %420 = sbr.rel (%p418) target = $region52
      $region51: #{tpu_custom_call.1} parent=5 // pred_region
        %s421 = ssub.s32 %s15, 2
        // Predicated region
        $region53: #{tpu_custom_call.1} parent=51 // pred_check
          %p422 = pneg %p175
        $region54: #{tpu_custom_call.1} parent=51 // pred_check_branch
          %424 = sbr.rel (%p422) target = $region56
        $region55: #{tpu_custom_call.1} parent=51 // pred_region
          %s425 = sand.u32 %s160, 1
          %s426 = scalar_lea.sflag [#allocation4], %s425
          %s427 = sand.u32 %s160, 1
          %s428 = smul.addr %s427, 8
          %s429 = scalar_lea.vmem [#allocation5], %s428
          %430 = dma.done %s426, 128
        $region56: #{tpu_custom_call.1} parent=51 // pred_fallthru
          _
      $region52: #{tpu_custom_call.1} parent=5 // pred_fallthru
        _
    $region6: #{tpu_custom_call.1} parent=1 // loop_footer
      %s19 = sadd.s32 1, %s15
    $region7: #{tpu_custom_call.1} parent=1 // loop_footer_branch
      %14 = sbr.rel target = $region3
    $region8: #{tpu_custom_call.1} parent=1 // loop_exit
      _
    %431 = vsyncpa [#allocation3], 1
    %s432 = scalar_lea.sflag [#allocation3], 1
    %433 = vsyncpa %s432, 1
    %434 = vsyncpa [#allocation4], 1
    %s435 = scalar_lea.sflag [#allocation4], 1
    %436 = vsyncpa %s435, 1

</llo_original>
